<compile_context>
chip_gen: v7x
topology: tpu7x:2x2x1
jax: 0.10.0
libtpu: 0.0.40
codegen_flags: <defaults>
</compile_context>

<pallas_src>
import functools
import math

import jax
import jax.numpy as jnp
from jax.experimental import pallas as pl
from jax.experimental.pallas import tpu as pltpu

DIM = 128          # hidden width of the reference module
HEAD_W = 128       # lane-dense padded head / output width
NOISE_STD = 0.4    # NoisyLinear std_init


# ----------------------------------------------------------------------------
# Kernel: one batch tile, whole forward pass, VMEM-resident weights.
# ----------------------------------------------------------------------------
def dueling_dqn_kernel(x_ref, wio_ref, whid_ref, b_ref, out_ref, *, ni_pad):
    """
    x_ref   : (Bt, ni_pad)             f32   input tile (cast to bf16 in-kernel)
    wio_ref : (ni_pad + 2*DIM, HEAD_W) bf16  dense pack:
                rows [0, ni_pad)            : w0 (zero rows past num_inputs)
                rows [ni_pad, ni_pad+DIM)   : head top  = wv2 replicated in cols 0:N
                rows [ni_pad+DIM, +2*DIM)   : head bot  = wa2 in cols 0:N,
                                              row-sum(wa2) in col N (adv-sum col)
    whid_ref: (DIM, 2*DIM)             bf16  [wv1 | wa1]
    b_ref   : (1, 3*DIM + HEAD_W)      f32   [b0 | bv1|ba1 | b_head]
    out_ref : (Bt, HEAD_W)             f32   head tile:
                cols [0, N)  : value + advantage
                col   N      : per-row advantage sum
                cols (N, ..] : 0
    """
    bf = whid_ref.dtype
    x = x_ref[...].astype(bf)                      # f32 -> bf16 in-kernel

    # ---- layer 0: relu(x @ w0 + b0) ---------------------------------------
    w0 = wio_ref[0:ni_pad, :]
    h = jnp.dot(x, w0, preferred_element_type=jnp.float32) + b_ref[:, 0:DIM]
    h = jnp.maximum(h, 0.0)

    # ---- fused value|advantage hidden layer: one (DIM, 2*DIM) matmul ------
    hid = (jnp.dot(h.astype(bf), whid_ref[...],
                   preferred_element_type=jnp.float32)
           + b_ref[:, DIM:3 * DIM])
    hid = jnp.maximum(hid, 0.0)                    # (Bt, 2*DIM) f32

    # ---- fused lane-dense head (adv-sum column folded into the matmul) ----
    w_head = wio_ref[ni_pad:ni_pad + 2 * DIM, :]
    head = (jnp.dot(hid.astype(bf), w_head,
                    preferred_element_type=jnp.float32)
            + b_ref[:, 3 * DIM:3 * DIM + HEAD_W])
    out_ref[...] = head


# ----------------------------------------------------------------------------
# Parameter packing (2 dense weight operands + 1 bias operand).
# ----------------------------------------------------------------------------
def pack_params(params, num_inputs, num_outputs):
    assert num_outputs < HEAD_W, "need num_outputs + 1 <= 128 for the adv-sum column"
    ni_pad = ((num_inputs + 15) // 16) * 16        # bf16 sublane-pack alignment
    adv_col = num_outputs

    # w_io: w0 stacked over the head block, fully dense (no zero columns).
    w0_blk = jnp.zeros((ni_pad, HEAD_W), jnp.float32)
    w0_blk = w0_blk.at[:num_inputs, :].set(params["w0"])

    head_top = jnp.zeros((DIM, HEAD_W), jnp.float32)
    head_top = head_top.at[:, :num_outputs].set(
        jnp.tile(params["wv2"], (1, num_outputs)))          # value into cols 0:N
    head_bot = jnp.zeros((DIM, HEAD_W), jnp.float32)
    head_bot = head_bot.at[:, :num_outputs].set(params["wa2"])
    head_bot = head_bot.at[:, adv_col:adv_col + 1].set(
        jnp.sum(params["wa2"], axis=1, keepdims=True))       # adv row-sum column

    w_io = jnp.concatenate([w0_blk, head_top, head_bot], axis=0).astype(jnp.bfloat16)

    # w_hid: fused [wv1 | wa1]
    w_hid = jnp.concatenate([params["wv1"], params["wa1"]], axis=1).astype(jnp.bfloat16)

    # biases stay f32 (VPU adds on the f32 path)
    b_head = jnp.zeros((1, HEAD_W), jnp.float32)
    b_head = b_head.at[:, :num_outputs].set(params["bv2"] + params["ba2"])
    b_head = b_head.at[:, adv_col].set(jnp.sum(params["ba2"]))
    bpack = jnp.concatenate(
        [params["b0"], params["bv1"], params["ba1"], b_head], axis=1)  # (1, 3*DIM+HEAD_W)

    return w_io, w_hid, bpack, ni_pad


# ----------------------------------------------------------------------------
# Wrapper: batch-tiled "parallel" grid + trivial XLA global-mean finalize.
# ----------------------------------------------------------------------------
def dueling_dqn_forward(x, w_io, w_hid, bpack, ni_pad, num_outputs, b_tile=128):
    """x: (B, num_inputs) f32.  Returns q: (B, num_outputs) f32."""
    B, num_inputs = x.shape
    if num_inputs < ni_pad:
        x = jnp.pad(x, ((0, 0), (0, ni_pad - num_inputs)))

    n_tiles = pl.cdiv(B, b_tile)
    B_pad = n_tiles * b_tile
    if B_pad > B:
        x = jnp.pad(x, ((0, B_pad - B), (0, 0)))

    kernel = functools.partial(dueling_dqn_kernel, ni_pad=ni_pad)
    head = pl.pallas_call(
        kernel,
        out_shape=jax.ShapeDtypeStruct((B_pad, HEAD_W), jnp.float32),
        grid=(n_tiles,),
        in_specs=[
            pl.BlockSpec((b_tile, ni_pad), lambda i: (i, 0)),       # x tile
            pl.BlockSpec(w_io.shape, lambda i: (0, 0)),             # VMEM-resident
            pl.BlockSpec(w_hid.shape, lambda i: (0, 0)),            # VMEM-resident
            pl.BlockSpec(bpack.shape, lambda i: (0, 0)),            # VMEM-resident
        ],
        out_specs=pl.BlockSpec((b_tile, HEAD_W), lambda i: (i, 0)),
        compiler_params=pltpu.CompilerParams(
            dimension_semantics=("parallel",)),
    )(x, w_io, w_hid, bpack)

    # Global advantage.mean() finalize (trivial XLA ops). Slicing to the true
    # batch first excludes any batch-pad rows from the mean.
    head = head[:B]
    mean_a = jnp.sum(head[:, num_outputs]) * (1.0 / (B * num_outputs))
    return head[:, :num_outputs] - mean_a


# ----------------------------------------------------------------------------
# Deterministic parameter construction mirroring the PyTorch module __init__.
# Noise is generated once (reset_noise) and folded into effective weights,
# i.e. training-mode NoisyLinear: W = mu + sigma * eps.
# ----------------------------------------------------------------------------
def _scale_noise(key, size):
    x = jax.random.normal(key, (size,), dtype=jnp.float32)
    return jnp.sign(x) * jnp.sqrt(jnp.abs(x))


def _noisy_linear_params(key, in_f, out_f, std_init=NOISE_STD):
    k_wmu, k_bmu, k_ein, k_eout, k_beps = jax.random.split(key, 5)
    mu_range = 1.0 / math.sqrt(in_f)
    weight_mu = jax.random.uniform(k_wmu, (out_f, in_f), jnp.float32,
                                   minval=-mu_range, maxval=mu_range)
    weight_sigma = jnp.full((out_f, in_f), std_init / math.sqrt(in_f), jnp.float32)
    bias_mu = jax.random.uniform(k_bmu, (out_f,), jnp.float32,
                                 minval=-mu_range, maxval=mu_range)
    bias_sigma = jnp.full((out_f,), std_init / math.sqrt(out_f), jnp.float32)

    eps_in = _scale_noise(k_ein, in_f)
    eps_out = _scale_noise(k_eout, out_f)
    weight_eps = jnp.outer(eps_out, eps_in)
    bias_eps = _scale_noise(k_beps, out_f)

    w_eff = weight_mu + weight_sigma * weight_eps          # (out, in)
    b_eff = bias_mu + bias_sigma * bias_eps                # (out,)
    return w_eff.T, b_eff.reshape(1, out_f)                # (in, out), (1, out)


def _linear_params(key, in_f, out_f):
    k_w, k_b = jax.random.split(key)
    bound = 1.0 / math.sqrt(in_f)
    w = jax.random.uniform(k_w, (out_f, in_f), jnp.float32, minval=-bound, maxval=bound)
    b = jax.random.uniform(k_b, (out_f,), jnp.float32, minval=-bound, maxval=bound)
    return w.T, b.reshape(1, out_f)


def make_params(key, num_inputs, num_outputs):
    k0, k1, k2, k3, k4 = jax.random.split(key, 5)
    w0, b0 = _linear_params(k0, num_inputs, DIM)
    wv1, bv1 = _noisy_linear_params(k1, DIM, DIM)
    wv2, bv2 = _noisy_linear_params(k2, DIM, 1)
    wa1, ba1 = _noisy_linear_params(k3, DIM, DIM)
    wa2, ba2 = _noisy_linear_params(k4, DIM, num_outputs)
    return dict(w0=w0, b0=b0, wv1=wv1, bv1=bv1, wv2=wv2, bv2=bv2,
                wa1=wa1, ba1=ba1, wa2=wa2, ba2=ba2)


# ----------------------------------------------------------------------------
# Pure-JAX reference matching the kernel's compute pattern (bf16 MXU inputs,
# f32 accumulation / elementwise) to validate fusion, packing and the folded
# advantage-sum column.
# ----------------------------------------------------------------------------
def dueling_dqn_reference(x, params):
    bf16 = jnp.bfloat16

    def mm(a, w):
        return jnp.dot(a.astype(bf16), w.astype(bf16),
                       preferred_element_type=jnp.float32)

    h = jnp.maximum(mm(x, params["w0"]) + params["b0"], 0.0)
    v = jnp.maximum(mm(h, params["wv1"]) + params["bv1"], 0.0)
    v = mm(v, params["wv2"]) + params["bv2"]
    a = jnp.maximum(mm(h, params["wa1"]) + params["ba1"], 0.0)
    a = mm(a, params["wa2"]) + params["ba2"]
    return v + a - jnp.mean(a)


if __name__ == "__main__":
    key = jax.random.PRNGKey(0)
    k_params, k_x = jax.random.split(key)

    batch = 256          # amortizes fixed cost; tiled as 2 x 128 "parallel" blocks
    num_inputs = 32
    num_outputs = 8

    params = make_params(k_params, num_inputs, num_outputs)
    w_io, w_hid, bpack, ni_pad = pack_params(params, num_inputs, num_outputs)
    x = jax.random.normal(k_x, (batch, num_inputs), dtype=jnp.float32)

    q = dueling_dqn_forward(x, w_io, w_hid, bpack, ni_pad, num_outputs, b_tile=128)
    jax.block_until_ready(q)

    q_ref = dueling_dqn_reference(x, params)

    assert q.shape == (batch, num_outputs)
    assert q.dtype == jnp.float32
    assert jnp.allclose(q, q_ref, atol=1e-2, rtol=1e-2)
    print("KERNEL_OK")
</pallas_src>

<mosaic_0001>
module attributes {stable_mosaic.version = 11 : i64} {
  func.func @dueling_dqn_kernel(%arg0: i32, %arg1: memref<128x32xf32, #tpu.memory_space<vmem>>, %arg2: memref<288x128xbf16, #tpu.memory_space<vmem>>, %arg3: memref<128x256xbf16, #tpu.memory_space<vmem>>, %arg4: memref<1x512xf32, #tpu.memory_space<vmem>>, %arg5: memref<128x128xf32, #tpu.memory_space<vmem>>) attributes {dimension_semantics = [#tpu.dimension_semantics<parallel>], iteration_bounds = array<i64: 2>, scalar_prefetch = 0 : i64, scratch_operands = 0 : i64, tpu.core_type = #tpu.core_type<tc>, window_params = [{transform_indices = @transform_0, window_bounds = array<i64: 128, 32>}, {pipeline_mode = #tpu.pipeline_mode<synchronous>, transform_indices = @transform_1, window_bounds = array<i64: 288, 128>}, {pipeline_mode = #tpu.pipeline_mode<synchronous>, transform_indices = @transform_2, window_bounds = array<i64: 128, 256>}, {pipeline_mode = #tpu.pipeline_mode<synchronous>, transform_indices = @transform_3, window_bounds = array<i64: 1, 512>}, {transform_indices = @transform_4, window_bounds = array<i64: 128, 128>}]} {
    %c0 = arith.constant 0 : index
    %c0_0 = arith.constant 0 : index
    %0 = vector.load %arg1[%c0, %c0_0] : memref<128x32xf32, #tpu.memory_space<vmem>>, vector<128x32xf32>
    %1 = arith.truncf %0 : vector<128x32xf32> to vector<128x32xbf16>
    %c0_1 = arith.constant 0 : index
    %c0_2 = arith.constant 0 : index
    %2 = vector.load %arg2[%c0_1, %c0_2] : memref<288x128xbf16, #tpu.memory_space<vmem>>, vector<32x128xbf16>
    %cst = arith.constant dense<0.000000e+00> : vector<128x128xf32>
    %3 = tpu.matmul %1, %2, %cst {dimension_numbers = #tpu.dot_dimension_numbers<[1], [0], [0], [1], [0, 0, 1, 1], [], []>} : vector<128x32xbf16>, vector<32x128xbf16>, vector<128x128xf32> -> vector<128x128xf32>
    %c0_3 = arith.constant 0 : index
    %c0_4 = arith.constant 0 : index
    %4 = vector.load %arg4[%c0_3, %c0_4] : memref<1x512xf32, #tpu.memory_space<vmem>>, vector<1x128xf32>
    %5 = vector.broadcast %4 : vector<1x128xf32> to vector<128x128xf32>
    %6 = arith.addf %3, %5 : vector<128x128xf32>
    %cst_5 = arith.constant 0.000000e+00 : f32
    %7 = vector.broadcast %cst_5 : f32 to vector<128x128xf32>
    %8 = arith.maximumf %6, %7 : vector<128x128xf32>
    %9 = arith.truncf %8 : vector<128x128xf32> to vector<128x128xbf16>
    %c0_6 = arith.constant 0 : index
    %c0_7 = arith.constant 0 : index
    %10 = vector.load %arg3[%c0_6, %c0_7] : memref<128x256xbf16, #tpu.memory_space<vmem>>, vector<128x256xbf16>
    %cst_8 = arith.constant dense<0.000000e+00> : vector<128x256xf32>
    %11 = tpu.matmul %9, %10, %cst_8 {dimension_numbers = #tpu.dot_dimension_numbers<[1], [0], [0], [1], [0, 0, 1, 1], [], []>} : vector<128x128xbf16>, vector<128x256xbf16>, vector<128x256xf32> -> vector<128x256xf32>
    %c0_9 = arith.constant 0 : index
    %c128 = arith.constant 128 : index
    %12 = vector.load %arg4[%c0_9, %c128] : memref<1x512xf32, #tpu.memory_space<vmem>>, vector<1x256xf32>
    %13 = vector.broadcast %12 : vector<1x256xf32> to vector<128x256xf32>
    %14 = arith.addf %11, %13 : vector<128x256xf32>
    %cst_10 = arith.constant 0.000000e+00 : f32
    %15 = vector.broadcast %cst_10 : f32 to vector<128x256xf32>
    %16 = arith.maximumf %14, %15 : vector<128x256xf32>
    %c32 = arith.constant 32 : index
    %c0_11 = arith.constant 0 : index
    %17 = vector.load %arg2[%c32, %c0_11] : memref<288x128xbf16, #tpu.memory_space<vmem>>, vector<256x128xbf16>
    %18 = arith.truncf %16 : vector<128x256xf32> to vector<128x256xbf16>
    %cst_12 = arith.constant dense<0.000000e+00> : vector<128x128xf32>
    %19 = tpu.matmul %18, %17, %cst_12 {dimension_numbers = #tpu.dot_dimension_numbers<[1], [0], [0], [1], [0, 0, 1, 1], [], []>} : vector<128x256xbf16>, vector<256x128xbf16>, vector<128x128xf32> -> vector<128x128xf32>
    %c0_13 = arith.constant 0 : index
    %c384 = arith.constant 384 : index
    %20 = vector.load %arg4[%c0_13, %c384] : memref<1x512xf32, #tpu.memory_space<vmem>>, vector<1x128xf32>
    %21 = vector.broadcast %20 : vector<1x128xf32> to vector<128x128xf32>
    %22 = arith.addf %19, %21 : vector<128x128xf32>
    %c0_14 = arith.constant 0 : index
    %c0_15 = arith.constant 0 : index
    %23 = vector.load %arg5[%c0_14, %c0_15] : memref<128x128xf32, #tpu.memory_space<vmem>>, vector<128x128xf32>
    tpu.vector_store %arg5[%c0_14, %c0_15], %22 {strides = array<i32>} : memref<128x128xf32, #tpu.memory_space<vmem>>, vector<128x128xf32>,
    return
  }
  func.func @transform_0(%arg0: i32) -> (i32, i32) {
    %c0_i32 = arith.constant 0 : i32
    %c0_i32_0 = arith.constant 0 : i32
    return %arg0, %c0_i32 : i32, i32
  }
  func.func @transform_1(%arg0: i32) -> (i32, i32) {
    %c0_i32 = arith.constant 0 : i32
    %c0_i32_0 = arith.constant 0 : i32
    %c0_i32_1 = arith.constant 0 : i32
    return %c0_i32, %c0_i32_0 : i32, i32
  }
  func.func @transform_2(%arg0: i32) -> (i32, i32) {
    %c0_i32 = arith.constant 0 : i32
    %c0_i32_0 = arith.constant 0 : i32
    %c0_i32_1 = arith.constant 0 : i32
    return %c0_i32, %c0_i32_0 : i32, i32
  }
  func.func @transform_3(%arg0: i32) -> (i32, i32) {
    %c0_i32 = arith.constant 0 : i32
    %c0_i32_0 = arith.constant 0 : i32
    %c0_i32_1 = arith.constant 0 : i32
    return %c0_i32, %c0_i32_0 : i32, i32
  }
  func.func @transform_4(%arg0: i32) -> (i32, i32) {
    %c0_i32 = arith.constant 0 : i32
    %c0_i32_0 = arith.constant 0 : i32
    return %arg0, %c0_i32 : i32, i32
  }
}

</mosaic_0001>

<llo_original>
// kernel: tpu_custom_call.1
$region0: #{tpu_custom_call.1}
  #allocation0 [shape = 'u32[]', space=smem, size = 0x4, offset = 0x4, fixed_abs, tag = 'smem constant byte address 0x4 - core index']
  #allocation1 [shape = 'u32[144,128]{1,0:T(1,128)}', space=vmem, size = 0x12000, scoped, tag = 'internal scratch']
  %s0 = inlined_call_operand.vmem [shape: f32[256,32], index: 0, kind: input, shape index: {}]
  %s1 = inlined_call_operand.vmem [shape: bf16[288,128], index: 1, kind: input, shape index: {}]
  %s2 = inlined_call_operand.vmem [shape: bf16[128,256], index: 2, kind: input, shape index: {}]
  %s3 = inlined_call_operand.vmem [shape: f32[1,512], index: 3, kind: input, shape index: {}]
  %s4 = inlined_call_operand.hbm [shape: f32[256,128], index: 4, kind: output, shape index: {}]
  %s5 = sld [smem:[#allocation0]]
  $region49: #{tpu_custom_call.1} parent=0
    _
  %s7 = ssub.s32 1, %s5
  %s8 = scalar_select 0, %s7, %s5
  $region1: #{tpu_custom_call.1} parent=0
    #allocation2 [shape = 'u8[131072]{0}', space=vmem, size = 0x20000, scoped, tag = 'output window, operand 0']
    #allocation3 [shape = 's32[2]{0}', space=sflag, size = 0x8, scoped, tag = 'scoped memory for tpu_custom_call.1']
    %9 = vsyncpa [#allocation3], 0
    %s10 = scalar_lea.sflag [#allocation3], 1
    %11 = vsyncpa %s10, 0
    loop: start=0, step=1, limit=4
    $region2: #{tpu_custom_call.1} parent=1 // loop_pre_header
      _
    $region3: #{tpu_custom_call.1} parent=1 // loop_header
      %s13 = sphi 0, %s17
      %p14 = scmp.ge.s32.totalorder %s13, 4
      %s23 = sphi 0, %s25
      %s26 = sphi 0, %s23
      %s27 = sphi 0, %s26
      %s43 = sphi 0, %s27
      %s47 = sphi 0, %s47
      %s49 = sphi 0, %s47
      %s50 = sphi 0, %s49
      %s64 = sphi 0, %s50
      %s68 = sphi 0, %s68
      %s70 = sphi 0, %s68
      %s71 = sphi 0, %s70
      %s85 = sphi 0, %s71
      %s89 = sphi 0, %s89
      %s91 = sphi 0, %s89
      %s92 = sphi 0, %s91
      %s106 = sphi 0, %s92
      %s112 = sphi 0, %s114
      %s115 = sphi 0, %s112
      %s116 = sphi 0, %s115
      %s132 = sphi 0, %s116
    $region4: #{tpu_custom_call.1} parent=1 // loop_header_branch
      %16 = sbr.rel (%p14) target = $region8
    $region5: #{tpu_custom_call.1} parent=1 // loop_body
      %s18 = ssub.s32 %s13, 1
      %s19 = ssub.s32 %s13, 2
      %s20 = sadd.s32 %s13, 1
      %s21 = ssub.s32 %s13, %s20
      %p22 = scmp.eq.s32.totalorder %s21, 0
      %s24 = sadd.s32 %s23, 1
      %s25 = scalar_select %p22, %s23, %s24
      %p28 = pneg %p22
      %p29 = scmp.eq.s32.totalorder %s13, 1
      %p30 = por %p28, %p29
      %p31 = scmp.ne.s32.totalorder %s23, %s26
      %p32 = scmp.eq.s32.totalorder %s13, 0
      %p33 = por %p31, %p32
      %p34 = scmp.ne.s32.totalorder %s23, %s26
      %p35 = scmp.eq.s32.totalorder %s18, 1
      %p36 = por %p34, %p35
      %p37 = scmp.ne.s32.totalorder %s26, %s27
      %p38 = scmp.eq.s32.totalorder %s18, 0
      %p39 = por %p37, %p38
      %p40 = scmp.ne.s32.totalorder %s26, %s27
      %p41 = scmp.eq.s32.totalorder %s19, 1
      %p42 = por %p40, %p41
      %p44 = scmp.ne.s32.totalorder %s27, %s43
      %p45 = scmp.eq.s32.totalorder %s19, 0
      %p46 = por %p44, %p45
      %s48 = sadd.s32 %s47, 1
      %p51 = scmp.eq.s32.totalorder %s13, 1
      %p52 = scmp.ne.s32.totalorder %s47, %s49
      %p53 = scmp.eq.s32.totalorder %s13, 0
      %p54 = por %p52, %p53
      %p55 = scmp.ne.s32.totalorder %s47, %s49
      %p56 = scmp.eq.s32.totalorder %s18, 1
      %p57 = por %p55, %p56
      %p58 = scmp.ne.s32.totalorder %s49, %s50
      %p59 = scmp.eq.s32.totalorder %s18, 0
      %p60 = por %p58, %p59
      %p61 = scmp.ne.s32.totalorder %s49, %s50
      %p62 = scmp.eq.s32.totalorder %s19, 1
      %p63 = por %p61, %p62
      %p65 = scmp.ne.s32.totalorder %s50, %s64
      %p66 = scmp.eq.s32.totalorder %s19, 0
      %p67 = por %p65, %p66
      %s69 = sadd.s32 %s68, 1
      %p72 = scmp.eq.s32.totalorder %s13, 1
      %p73 = scmp.ne.s32.totalorder %s68, %s70
      %p74 = scmp.eq.s32.totalorder %s13, 0
      %p75 = por %p73, %p74
      %p76 = scmp.ne.s32.totalorder %s68, %s70
      %p77 = scmp.eq.s32.totalorder %s18, 1
      %p78 = por %p76, %p77
      %p79 = scmp.ne.s32.totalorder %s70, %s71
      %p80 = scmp.eq.s32.totalorder %s18, 0
      %p81 = por %p79, %p80
      %p82 = scmp.ne.s32.totalorder %s70, %s71
      %p83 = scmp.eq.s32.totalorder %s19, 1
      %p84 = por %p82, %p83
      %p86 = scmp.ne.s32.totalorder %s71, %s85
      %p87 = scmp.eq.s32.totalorder %s19, 0
      %p88 = por %p86, %p87
      %s90 = sadd.s32 %s89, 1
      %p93 = scmp.eq.s32.totalorder %s13, 1
      %p94 = scmp.ne.s32.totalorder %s89, %s91
      %p95 = scmp.eq.s32.totalorder %s13, 0
      %p96 = por %p94, %p95
      %p97 = scmp.ne.s32.totalorder %s89, %s91
      %p98 = scmp.eq.s32.totalorder %s18, 1
      %p99 = por %p97, %p98
      %p100 = scmp.ne.s32.totalorder %s91, %s92
      %p101 = scmp.eq.s32.totalorder %s18, 0
      %p102 = por %p100, %p101
      %p103 = scmp.ne.s32.totalorder %s91, %s92
      %p104 = scmp.eq.s32.totalorder %s19, 1
      %p105 = por %p103, %p104
      %p107 = scmp.ne.s32.totalorder %s92, %s106
      %p108 = scmp.eq.s32.totalorder %s19, 0
      %p109 = por %p107, %p108
      %s110 = ssub.s32 %s13, %s20
      %p111 = scmp.eq.s32.totalorder %s110, 0
      %s113 = sadd.s32 %s112, 1
      %s114 = scalar_select %p111, %s112, %s113
      %p117 = pneg %p111
      %p118 = scmp.eq.s32.totalorder %s13, 1
      %p119 = por %p117, %p118
      %p120 = scmp.ne.s32.totalorder %s112, %s115
      %p121 = scmp.eq.s32.totalorder %s13, 0
      %p122 = por %p120, %p121
      %p123 = scmp.ne.s32.totalorder %s112, %s115
      %p124 = scmp.eq.s32.totalorder %s18, 1
      %p125 = por %p123, %p124
      %p126 = scmp.ne.s32.totalorder %s115, %s116
      %p127 = scmp.eq.s32.totalorder %s18, 0
      %p128 = por %p126, %p127
      %p129 = scmp.ne.s32.totalorder %s115, %s116
      %p130 = scmp.eq.s32.totalorder %s19, 1
      %p131 = por %p129, %p130
      %p133 = scmp.ne.s32.totalorder %s116, %s132
      %p134 = scmp.eq.s32.totalorder %s19, 0
      %p135 = por %p133, %p134
      %p136 = scmp.le.s32.totalorder 1, %s13
      %p137 = scmp.lt.s32.totalorder %s13, 3
      %p138 = pnand %p136, %p137
      %p139 = pneg %p138
      // Predicated region
      $region9: #{tpu_custom_call.1} parent=5 // pred_check
        _
      $region10: #{tpu_custom_call.1} parent=5 // pred_check_branch
        %141 = sbr.rel (%p138) target = $region12
      $region11: #{tpu_custom_call.1} parent=5 // pred_region
        %s142 = ssub.s32 %s13, 1
        // Predicated region
        $region13: #{tpu_custom_call.1} parent=11 // pred_check
          %p143 = pneg %p60
        $region14: #{tpu_custom_call.1} parent=11 // pred_check_branch
          %145 = sbr.rel (%p143) target = $region16
        $region15: #{tpu_custom_call.1} parent=11 // pred_region
          _
        $region16: #{tpu_custom_call.1} parent=11 // pred_fallthru
          _
        // Predicated region
        $region17: #{tpu_custom_call.1} parent=11 // pred_check
          %p146 = pneg %p81
        $region18: #{tpu_custom_call.1} parent=11 // pred_check_branch
          %148 = sbr.rel (%p146) target = $region20
        $region19: #{tpu_custom_call.1} parent=11 // pred_region
          _
        $region20: #{tpu_custom_call.1} parent=11 // pred_fallthru
          _
        // Predicated region
        $region21: #{tpu_custom_call.1} parent=11 // pred_check
          %p149 = pneg %p102
        $region22: #{tpu_custom_call.1} parent=11 // pred_check_branch
          %151 = sbr.rel (%p149) target = $region24
        $region23: #{tpu_custom_call.1} parent=11 // pred_region
          _
        $region24: #{tpu_custom_call.1} parent=11 // pred_fallthru
          _
      $region12: #{tpu_custom_call.1} parent=5 // pred_fallthru
        _
      %p152 = scmp.lt.s32.totalorder %s13, 2
      // Predicated region
      $region25: #{tpu_custom_call.1} parent=5 // pred_check
        %p153 = pneg %p152
      $region26: #{tpu_custom_call.1} parent=5 // pred_check_branch
        %155 = sbr.rel (%p153) target = $region28
      $region27: #{tpu_custom_call.1} parent=5 // pred_region
        // Predicated region
        $region29: #{tpu_custom_call.1} parent=27 // pred_check
          %p156 = pneg %p33
        $region30: #{tpu_custom_call.1} parent=27 // pred_check_branch
          %158 = sbr.rel (%p156) target = $region32
        $region31: #{tpu_custom_call.1} parent=27 // pred_region
          %s159 = smul.u32 16, %s13
          %p160 = scmp.lt.s32.totalorder %s159, 31
          %s161 = scalar_select %p160, %s159, 31
          %s162 = smul.addr %s161, 8
          %s163 = scalar_lea.vmem %s0, %s162
          %s164 = smul.u32 16, %s13
        $region32: #{tpu_custom_call.1} parent=27 // pred_fallthru
          _
      $region28: #{tpu_custom_call.1} parent=5 // pred_fallthru
        _
      %p165 = scmp.le.s32.totalorder 1, %s13
      %p166 = scmp.lt.s32.totalorder %s13, 3
      %p167 = pnand %p165, %p166
      %p168 = pneg %p167
      // Predicated region
      $region33: #{tpu_custom_call.1} parent=5 // pred_check
        _
      $region34: #{tpu_custom_call.1} parent=5 // pred_check_branch
        %170 = sbr.rel (%p167) target = $region36
      $region35: #{tpu_custom_call.1} parent=5 // pred_region
        %s171 = ssub.s32 %s13, 1
        %s172 = smul.u32 16, %s18
        %p173 = scmp.lt.s32.totalorder %s172, 31
        %s174 = scalar_select %p173, %s172, 31
        %s175 = smul.addr %s174, 8
        %s176 = scalar_lea.vmem %s0, %s175
        %p177 = pneg %p39
        %p178 = pneg %p36
        %p179 = pneg %p60
        %p180 = pneg %p57
        %p181 = pneg %p81
        %p182 = pneg %p78
        %p183 = pneg %p102
        %p184 = pneg %p99
        %p185 = pneg %p128
        %p186 = pneg %p125
        %s187 = sand.u32 %s115, 1
        %s188 = scalar_lea.sflag [#allocation3], %s187
        %s189 = sand.u32 %s115, 1
        %s190 = smul.addr %s189, 128
        %s191 = scalar_lea.vmem [#allocation2], %s190
        %s192 = smul.u32 16, %s18
        %p193 = scmp.lt.s32.totalorder %s192, 31
        %s194 = scalar_select %p193, %s192, 31
        %s195 = smul.addr %s194, 8
        %s196 = scalar_lea.vmem %s0, %s195
        %s197 = smul.u32 16, %s18
        %s198 = smul.u32 16, %s18
        %v200 = vld [vmem:[%s196] sm:$0xff]
        %v201 = vld [vmem:[%s196 + $0x8] sm:$0xff]
        %v202 = vld [vmem:[%s196 + $0x10] sm:$0xff]
        %v203 = vld [vmem:[%s196 + $0x18] sm:$0xff]
        %v204 = vld [vmem:[%s196 + $0x20] sm:$0xff]
        %v205 = vld [vmem:[%s196 + $0x28] sm:$0xff]
        %v206 = vld [vmem:[%s196 + $0x30] sm:$0xff]
        %v207 = vld [vmem:[%s196 + $0x38] sm:$0xff]
        %v208 = vld [vmem:[%s196 + $0x40] sm:$0xff]
        %v209 = vld [vmem:[%s196 + $0x48] sm:$0xff]
        %v210 = vld [vmem:[%s196 + $0x50] sm:$0xff]
        %v211 = vld [vmem:[%s196 + $0x58] sm:$0xff]
        %v212 = vld [vmem:[%s196 + $0x60] sm:$0xff]
        %v213 = vld [vmem:[%s196 + $0x68] sm:$0xff]
        %v214 = vld [vmem:[%s196 + $0x70] sm:$0xff]
        %v215 = vld [vmem:[%s196 + $0x78] sm:$0xff]
        %v216 = vpack.c.bf16 %v201, %v200
        %v217 = vpack.c.bf16 %v203, %v202
        %v218 = vpack.c.bf16 %v205, %v204
        %v219 = vpack.c.bf16 %v207, %v206
        %v220 = vpack.c.bf16 %v209, %v208
        %v221 = vpack.c.bf16 %v211, %v210
        %v222 = vpack.c.bf16 %v213, %v212
        %v223 = vpack.c.bf16 %v215, %v214
        %v224 = vld [vmem:[%s1] sm:$0xf]
        %v225 = vld [vmem:[%s1 + $0x4] sm:$0xf]
        %v226 = vld [vmem:[%s1 + $0x8] sm:$0xf]
        %v227 = vld [vmem:[%s1 + $0xc] sm:$0xf]
        %v228 = vld [vmem:[%s3] sm:$0x1]
        %v230 = vlaneseq
        %v231 = vshrl.u32 %v230, 7
        %v232 = vsub.s32 0, %v231
        %v233 = vrot.slane %v228, %v232
        %v239 = vunpack.c.l.b16 %v224
        %v240 = vunpack.c.l.b16 %v225
        %v241 = vunpack.c.l.b16 %v226
        %v242 = vunpack.c.l.b16 %v227
        %v243 = vpack.c.b16 %v240, %v239
        %v244 = vpack.c.b16 %v242, %v241
        %vm247 = vcmask 261120
        %v249 = vsel %vm247, %v216, 0
        %v252 = vsel %vm247, %v217, 0
        %v255 = vsel %vm247, %v218, 0
        %v258 = vsel %vm247, %v219, 0
        %v261 = vsel %vm247, %v220, 0
        %v264 = vsel %vm247, %v221, 0
        %v267 = vsel %vm247, %v222, 0
        %v270 = vsel %vm247, %v223, 0
        %272 = vmatprep.subr.bf16.mxu0 0
        %273 = vmatpush1.bf16.msra.mxu0 %v243
        %274 = vmatprep.subr.bf16.mxu0 0
        %275 = vmatpush1.bf16.msra.mxu0 %v244
        %276 = vmatprep.subr.bf16.mxu0 0
        %277 = vmatpush1.bf16.msra.mxu0 0
        %278 = vmatprep.subr.bf16.mxu0 0
        %279 = vmatpush1.bf16.msra.mxu0 0
        %280 = vmatprep.subr.bf16.mxu0 0
        %281 = vmatpush1.bf16.msra.mxu0 0
        %282 = vmatprep.subr.bf16.mxu0 0
        %283 = vmatpush1.bf16.msra.mxu0 0
        %284 = vmatprep.subr.bf16.mxu0 0
        %285 = vmatpush1.bf16.msra.mxu0 0
        %286 = vmatprep.subr.bf16.mxu0 0
        %287 = vmatpush1.bf16.msra.mxu0 0
        %288 = vmatprep.subr.bf16.mxu0 0
        %289 = vmatpush1.bf16.msra.mxu0 0
        %290 = vmatprep.subr.bf16.mxu0 0
        %291 = vmatpush1.bf16.msra.mxu0 0
        %292 = vmatprep.subr.bf16.mxu0 0
        %293 = vmatpush1.bf16.msra.mxu0 0
        %294 = vmatprep.subr.bf16.mxu0 0
        %295 = vmatpush1.bf16.msra.mxu0 0
        %296 = vmatprep.subr.bf16.mxu0 0
        %297 = vmatpush1.bf16.msra.mxu0 0
        %298 = vmatprep.subr.bf16.mxu0 0
        %299 = vmatpush1.bf16.msra.mxu0 0
        %300 = vmatprep.subr.bf16.mxu0 0
        %301 = vmatpush1.bf16.msra.mxu0 0
        %302 = vmatprep.subr.bf16.mxu0 0
        %303 = vmatpush1.bf16.msra.mxu0 0
        %304 = vmatprep.mubr.bf16.mxu0 0
        %305 = vmatmul.mubr.bf16.gmra.mrb[0].mxu0 %v249
        %v306 = vpop.f32.mrb[0].mxu0
        %v307 = vadd.f32 %v233, %v306
        %v308 = vpop.f32.mrb[0].mxu0
        %v309 = vpop.f32.mrb[0].mxu0
        %v310 = vadd.f32 %v233, %v309
        %v311 = vpop.f32.mrb[0].mxu0
        %312 = vmatprep.mubr.bf16.mxu0 0
        %313 = vmatmul.mubr.bf16.gmra.mrb[0].mxu0 %v252
        %v314 = vpop.f32.mrb[0].mxu0
        %v315 = vadd.f32 %v233, %v314
        %v316 = vpop.f32.mrb[0].mxu0
        %v317 = vpop.f32.mrb[0].mxu0
        %v318 = vadd.f32 %v233, %v317
        %v319 = vpop.f32.mrb[0].mxu0
        %320 = vmatprep.mubr.bf16.mxu0 0
        %321 = vmatmul.mubr.bf16.gmra.mrb[0].mxu0 %v255
        %v322 = vpop.f32.mrb[0].mxu0
        %v323 = vadd.f32 %v233, %v322
        %v324 = vpop.f32.mrb[0].mxu0
        %v325 = vpop.f32.mrb[0].mxu0
        %v326 = vadd.f32 %v233, %v325
        %v327 = vpop.f32.mrb[0].mxu0
        %328 = vmatprep.mubr.bf16.mxu0 0
        %329 = vmatmul.mubr.bf16.gmra.mrb[0].mxu0 %v258
        %v330 = vpop.f32.mrb[0].mxu0
        %v331 = vadd.f32 %v233, %v330
        %v332 = vpop.f32.mrb[0].mxu0
        %v333 = vpop.f32.mrb[0].mxu0
        %v334 = vadd.f32 %v233, %v333
        %v335 = vpop.f32.mrb[0].mxu0
        %336 = vmatprep.mubr.bf16.mxu0 0
        %337 = vmatmul.mubr.bf16.gmra.mrb[0].mxu0 %v261
        %v338 = vpop.f32.mrb[0].mxu0
        %v339 = vadd.f32 %v233, %v338
        %v340 = vpop.f32.mrb[0].mxu0
        %v341 = vpop.f32.mrb[0].mxu0
        %v342 = vadd.f32 %v233, %v341
        %v343 = vpop.f32.mrb[0].mxu0
        %344 = vmatprep.mubr.bf16.mxu0 0
        %345 = vmatmul.mubr.bf16.gmra.mrb[0].mxu0 %v264
        %v346 = vpop.f32.mrb[0].mxu0
        %v347 = vadd.f32 %v233, %v346
        %v348 = vpop.f32.mrb[0].mxu0
        %v349 = vpop.f32.mrb[0].mxu0
        %v350 = vadd.f32 %v233, %v349
        %v351 = vpop.f32.mrb[0].mxu0
        %352 = vmatprep.mubr.bf16.mxu0 0
        %353 = vmatmul.mubr.bf16.gmra.mrb[0].mxu0 %v267
        %v354 = vpop.f32.mrb[0].mxu0
        %v355 = vadd.f32 %v233, %v354
        %v356 = vpop.f32.mrb[0].mxu0
        %v357 = vpop.f32.mrb[0].mxu0
        %v358 = vadd.f32 %v233, %v357
        %v359 = vpop.f32.mrb[0].mxu0
        %360 = vmatprep.mubr.bf16.mxu0 0
        %361 = vmatmul.mubr.bf16.gmra.mrb[0].mxu0 %v270
        %v362 = vpop.f32.mrb[0].mxu0
        %v363 = vadd.f32 %v233, %v362
        %v364 = vpop.f32.mrb[0].mxu0
        %v365 = vpop.f32.mrb[0].mxu0
        %v366 = vadd.f32 %v233, %v365
        %v367 = vpop.f32.mrb[0].mxu0
        %368 = vdwg.mxu0
        %v369 = vmax.f32 %v307, 0.0
        %v370 = vmax.f32 %v310, 0.0
        %v371 = vmax.f32 %v315, 0.0
        %v372 = vmax.f32 %v318, 0.0
        %v373 = vmax.f32 %v323, 0.0
        %v374 = vmax.f32 %v326, 0.0
        %v375 = vmax.f32 %v331, 0.0
        %v376 = vmax.f32 %v334, 0.0
        %v377 = vmax.f32 %v339, 0.0
        %v378 = vmax.f32 %v342, 0.0
        %v379 = vmax.f32 %v347, 0.0
        %v380 = vmax.f32 %v350, 0.0
        %v381 = vmax.f32 %v355, 0.0
        %v382 = vmax.f32 %v358, 0.0
        %v383 = vmax.f32 %v363, 0.0
        %v384 = vmax.f32 %v366, 0.0
        %v385 = vpack.c.bf16 %v370, %v369
        %v386 = vpack.c.bf16 %v372, %v371
        %v387 = vpack.c.bf16 %v374, %v373
        %v388 = vpack.c.bf16 %v376, %v375
        %v389 = vpack.c.bf16 %v378, %v377
        %v390 = vpack.c.bf16 %v380, %v379
        %v391 = vpack.c.bf16 %v382, %v381
        %v392 = vpack.c.bf16 %v384, %v383
        %v393 = vld [vmem:[%s2] sm:$0xff]
        %v394 = vld [vmem:[%s2 + $0x8] sm:$0xff]
        %v395 = vld [vmem:[%s2 + $0x10] sm:$0xff]
        %v396 = vld [vmem:[%s2 + $0x18] sm:$0xff]
        %v397 = vld [vmem:[%s2 + $0x20] sm:$0xff]
        %v398 = vld [vmem:[%s2 + $0x28] sm:$0xff]
        %v399 = vld [vmem:[%s2 + $0x30] sm:$0xff]
        %v400 = vld [vmem:[%s2 + $0x38] sm:$0xff]
        %v401 = vld [vmem:[%s2 + $0x40] sm:$0xff]
        %v402 = vld [vmem:[%s2 + $0x48] sm:$0xff]
        %v403 = vld [vmem:[%s2 + $0x50] sm:$0xff]
        %v404 = vld [vmem:[%s2 + $0x58] sm:$0xff]
        %v405 = vld [vmem:[%s2 + $0x60] sm:$0xff]
        %v406 = vld [vmem:[%s2 + $0x68] sm:$0xff]
        %v407 = vld [vmem:[%s2 + $0x70] sm:$0xff]
        %v408 = vld [vmem:[%s2 + $0x78] sm:$0xff]
        %v409 = vld [vmem:[%s3 + $0x1] sm:$0x3]
        %v411 = vlaneseq
        %v412 = vshrl.u32 %v411, 7
        %v413 = vsub.s32 0, %v412
        %v414 = vrot.slane %v409, %v413
        %v415 = vlaneseq
        %v416 = vshrl.u32 %v415, 7
        %v417 = vsub.s32 1, %v416
        %v418 = vrot.slane %v409, %v417
        %v437 = vunpack.c.l.b16 %v393
        %v438 = vunpack.c.h.b16 %v393
        %v439 = vunpack.c.l.b16 %v394
        %v440 = vunpack.c.h.b16 %v394
        %v441 = vunpack.c.l.b16 %v395
        %v442 = vunpack.c.h.b16 %v395
        %v443 = vunpack.c.l.b16 %v396
        %v444 = vunpack.c.h.b16 %v396
        %v445 = vunpack.c.l.b16 %v397
        %v446 = vunpack.c.h.b16 %v397
        %v447 = vunpack.c.l.b16 %v398
        %v448 = vunpack.c.h.b16 %v398
        %v449 = vunpack.c.l.b16 %v399
        %v450 = vunpack.c.h.b16 %v399
        %v451 = vunpack.c.l.b16 %v400
        %v452 = vunpack.c.h.b16 %v400
        %v453 = vunpack.c.l.b16 %v401
        %v454 = vunpack.c.h.b16 %v401
        %v455 = vunpack.c.l.b16 %v402
        %v456 = vunpack.c.h.b16 %v402
        %v457 = vunpack.c.l.b16 %v403
        %v458 = vunpack.c.h.b16 %v403
        %v459 = vunpack.c.l.b16 %v404
        %v460 = vunpack.c.h.b16 %v404
        %v461 = vunpack.c.l.b16 %v405
        %v462 = vunpack.c.h.b16 %v405
        %v463 = vunpack.c.l.b16 %v406
        %v464 = vunpack.c.h.b16 %v406
        %v465 = vunpack.c.l.b16 %v407
        %v466 = vunpack.c.h.b16 %v407
        %v467 = vunpack.c.l.b16 %v408
        %v468 = vunpack.c.h.b16 %v408
        %v469 = vpack.c.b16 %v439, %v437
        %v470 = vpack.c.b16 %v440, %v438
        %v471 = vpack.c.b16 %v443, %v441
        %v472 = vpack.c.b16 %v444, %v442
        %v473 = vpack.c.b16 %v447, %v445
        %v474 = vpack.c.b16 %v448, %v446
        %v475 = vpack.c.b16 %v451, %v449
        %v476 = vpack.c.b16 %v452, %v450
        %v477 = vpack.c.b16 %v455, %v453
        %v478 = vpack.c.b16 %v456, %v454
        %v479 = vpack.c.b16 %v459, %v457
        %v480 = vpack.c.b16 %v460, %v458
        %v481 = vpack.c.b16 %v463, %v461
        %v482 = vpack.c.b16 %v464, %v462
        %v483 = vpack.c.b16 %v467, %v465
        %v484 = vpack.c.b16 %v468, %v466
        %501 = vmatprep.subr.bf16.mxu0 %v470
        %502 = vmatpush1.bf16.msra.mxu0 %v469
        %503 = vmatprep.subr.bf16.mxu0 %v472
        %504 = vmatpush1.bf16.msra.mxu0 %v471
        %505 = vmatprep.subr.bf16.mxu0 %v474
        %506 = vmatpush1.bf16.msra.mxu0 %v473
        %507 = vmatprep.subr.bf16.mxu0 %v476
        %508 = vmatpush1.bf16.msra.mxu0 %v475
        %509 = vmatprep.subr.bf16.mxu0 %v478
        %510 = vmatpush1.bf16.msra.mxu0 %v477
        %511 = vmatprep.subr.bf16.mxu0 %v480
        %512 = vmatpush1.bf16.msra.mxu0 %v479
        %513 = vmatprep.subr.bf16.mxu0 %v482
        %514 = vmatpush1.bf16.msra.mxu0 %v481
        %515 = vmatprep.subr.bf16.mxu0 %v484
        %516 = vmatpush1.bf16.msra.mxu0 %v483
        %517 = vmatprep.subr.bf16.mxu0 0
        %518 = vmatpush1.bf16.msra.mxu0 0
        %519 = vmatprep.subr.bf16.mxu0 0
        %520 = vmatpush1.bf16.msra.mxu0 0
        %521 = vmatprep.subr.bf16.mxu0 0
        %522 = vmatpush1.bf16.msra.mxu0 0
        %523 = vmatprep.subr.bf16.mxu0 0
        %524 = vmatpush1.bf16.msra.mxu0 0
        %525 = vmatprep.subr.bf16.mxu0 0
        %526 = vmatpush1.bf16.msra.mxu0 0
        %527 = vmatprep.subr.bf16.mxu0 0
        %528 = vmatpush1.bf16.msra.mxu0 0
        %529 = vmatprep.subr.bf16.mxu0 0
        %530 = vmatpush1.bf16.msra.mxu0 0
        %531 = vmatprep.subr.bf16.mxu0 0
        %532 = vmatpush1.bf16.msra.mxu0 0
        %533 = vmatprep.mubr.bf16.mxu0 0
        %534 = vmatmul.mubr.bf16.gmra.mrb[0].mxu0 %v385
        %v535 = vpop.f32.mrb[0].mxu0
        %v536 = vadd.f32 %v414, %v535
        %v537 = vpop.f32.mrb[0].mxu0
        %v538 = vadd.f32 %v418, %v537
        %v539 = vpop.f32.mrb[0].mxu0
        %v540 = vadd.f32 %v414, %v539
        %v541 = vpop.f32.mrb[0].mxu0
        %v542 = vadd.f32 %v418, %v541
        %543 = vmatprep.mubr.bf16.mxu0 0
        %544 = vmatmul.mubr.bf16.gmra.mrb[0].mxu0 %v386
        %v545 = vpop.f32.mrb[0].mxu0
        %v546 = vadd.f32 %v414, %v545
        %v547 = vpop.f32.mrb[0].mxu0
        %v548 = vadd.f32 %v418, %v547
        %v549 = vpop.f32.mrb[0].mxu0
        %v550 = vadd.f32 %v414, %v549
        %v551 = vpop.f32.mrb[0].mxu0
        %v552 = vadd.f32 %v418, %v551
        %553 = vmatprep.mubr.bf16.mxu0 0
        %554 = vmatmul.mubr.bf16.gmra.mrb[0].mxu0 %v387
        %v555 = vpop.f32.mrb[0].mxu0
        %v556 = vadd.f32 %v414, %v555
        %v557 = vpop.f32.mrb[0].mxu0
        %v558 = vadd.f32 %v418, %v557
        %v559 = vpop.f32.mrb[0].mxu0
        %v560 = vadd.f32 %v414, %v559
        %v561 = vpop.f32.mrb[0].mxu0
        %v562 = vadd.f32 %v418, %v561
        %563 = vmatprep.mubr.bf16.mxu0 0
        %564 = vmatmul.mubr.bf16.gmra.mrb[0].mxu0 %v388
        %v565 = vpop.f32.mrb[0].mxu0
        %v566 = vadd.f32 %v414, %v565
        %v567 = vpop.f32.mrb[0].mxu0
        %v568 = vadd.f32 %v418, %v567
        %v569 = vpop.f32.mrb[0].mxu0
        %v570 = vadd.f32 %v414, %v569
        %v571 = vpop.f32.mrb[0].mxu0
        %v572 = vadd.f32 %v418, %v571
        %573 = vmatprep.mubr.bf16.mxu0 0
        %574 = vmatmul.mubr.bf16.gmra.mrb[0].mxu0 %v389
        %v575 = vpop.f32.mrb[0].mxu0
        %v576 = vadd.f32 %v414, %v575
        %v577 = vpop.f32.mrb[0].mxu0
        %v578 = vadd.f32 %v418, %v577
        %v579 = vpop.f32.mrb[0].mxu0
        %v580 = vadd.f32 %v414, %v579
        %v581 = vpop.f32.mrb[0].mxu0
        %v582 = vadd.f32 %v418, %v581
        %583 = vmatprep.mubr.bf16.mxu0 0
        %584 = vmatmul.mubr.bf16.gmra.mrb[0].mxu0 %v390
        %v585 = vpop.f32.mrb[0].mxu0
        %v586 = vadd.f32 %v414, %v585
        %v587 = vpop.f32.mrb[0].mxu0
        %v588 = vadd.f32 %v418, %v587
        %v589 = vpop.f32.mrb[0].mxu0
        %v590 = vadd.f32 %v414, %v589
        %v591 = vpop.f32.mrb[0].mxu0
        %v592 = vadd.f32 %v418, %v591
        %593 = vmatprep.mubr.bf16.mxu0 0
        %594 = vmatmul.mubr.bf16.gmra.mrb[0].mxu0 %v391
        %v595 = vpop.f32.mrb[0].mxu0
        %v596 = vadd.f32 %v414, %v595
        %v597 = vpop.f32.mrb[0].mxu0
        %v598 = vadd.f32 %v418, %v597
        %v599 = vpop.f32.mrb[0].mxu0
        %v600 = vadd.f32 %v414, %v599
        %v601 = vpop.f32.mrb[0].mxu0
        %v602 = vadd.f32 %v418, %v601
        %603 = vmatprep.mubr.bf16.mxu0 0
        %604 = vmatmul.mubr.bf16.gmra.mrb[0].mxu0 %v392
        %v605 = vpop.f32.mrb[0].mxu0
        %v606 = vadd.f32 %v414, %v605
        %v607 = vpop.f32.mrb[0].mxu0
        %v608 = vadd.f32 %v418, %v607
        %v609 = vpop.f32.mrb[0].mxu0
        %v610 = vadd.f32 %v414, %v609
        %v611 = vpop.f32.mrb[0].mxu0
        %v612 = vadd.f32 %v418, %v611
        %613 = vdwg.mxu0
        %v614 = vmax.f32 %v536, 0.0
        %v615 = vmax.f32 %v538, 0.0
        %v616 = vmax.f32 %v540, 0.0
        %v617 = vmax.f32 %v542, 0.0
        %v618 = vmax.f32 %v546, 0.0
        %v619 = vmax.f32 %v548, 0.0
        %v620 = vmax.f32 %v550, 0.0
        %v621 = vmax.f32 %v552, 0.0
        %v622 = vmax.f32 %v556, 0.0
        %v623 = vmax.f32 %v558, 0.0
        %v624 = vmax.f32 %v560, 0.0
        %v625 = vmax.f32 %v562, 0.0
        %v626 = vmax.f32 %v566, 0.0
        %v627 = vmax.f32 %v568, 0.0
        %v628 = vmax.f32 %v570, 0.0
        %v629 = vmax.f32 %v572, 0.0
        %v630 = vmax.f32 %v576, 0.0
        %v631 = vmax.f32 %v578, 0.0
        %v632 = vmax.f32 %v580, 0.0
        %v633 = vmax.f32 %v582, 0.0
        %v634 = vmax.f32 %v586, 0.0
        %v635 = vmax.f32 %v588, 0.0
        %v636 = vmax.f32 %v590, 0.0
        %v637 = vmax.f32 %v592, 0.0
        %v638 = vmax.f32 %v596, 0.0
        %v639 = vmax.f32 %v598, 0.0
        %v640 = vmax.f32 %v600, 0.0
        %v641 = vmax.f32 %v602, 0.0
        %v642 = vmax.f32 %v606, 0.0
        %v643 = vmax.f32 %v608, 0.0
        %v644 = vmax.f32 %v610, 0.0
        %v645 = vmax.f32 %v612, 0.0
        %v646 = vld [vmem:[%s1 + $0x10] sm:$0xf]
        %v647 = vld [vmem:[%s1 + $0x14] sm:$0xf]
        %v648 = vld [vmem:[%s1 + $0x18] sm:$0xf]
        %v649 = vld [vmem:[%s1 + $0x1c] sm:$0xf]
        %v650 = vld [vmem:[%s1 + $0x20] sm:$0xf]
        %v651 = vld [vmem:[%s1 + $0x24] sm:$0xf]
        %v652 = vld [vmem:[%s1 + $0x28] sm:$0xf]
        %v653 = vld [vmem:[%s1 + $0x2c] sm:$0xf]
        %v654 = vld [vmem:[%s1 + $0x30] sm:$0xf]
        %v655 = vld [vmem:[%s1 + $0x34] sm:$0xf]
        %v656 = vld [vmem:[%s1 + $0x38] sm:$0xf]
        %v657 = vld [vmem:[%s1 + $0x3c] sm:$0xf]
        %v658 = vld [vmem:[%s1 + $0x40] sm:$0xf]
        %v659 = vld [vmem:[%s1 + $0x44] sm:$0xf]
        %v660 = vld [vmem:[%s1 + $0x48] sm:$0xf]
        %v661 = vld [vmem:[%s1 + $0x4c] sm:$0xf]
        %v662 = vld [vmem:[%s1 + $0x50] sm:$0xf]
        %v663 = vld [vmem:[%s1 + $0x54] sm:$0xf]
        %v664 = vld [vmem:[%s1 + $0x58] sm:$0xf]
        %v665 = vld [vmem:[%s1 + $0x5c] sm:$0xf]
        %v666 = vld [vmem:[%s1 + $0x60] sm:$0xf]
        %v667 = vld [vmem:[%s1 + $0x64] sm:$0xf]
        %v668 = vld [vmem:[%s1 + $0x68] sm:$0xf]
        %v669 = vld [vmem:[%s1 + $0x6c] sm:$0xf]
        %v670 = vld [vmem:[%s1 + $0x70] sm:$0xf]
        %v671 = vld [vmem:[%s1 + $0x74] sm:$0xf]
        %v672 = vld [vmem:[%s1 + $0x78] sm:$0xf]
        %v673 = vld [vmem:[%s1 + $0x7c] sm:$0xf]
        %v674 = vld [vmem:[%s1 + $0x80] sm:$0xf]
        %v675 = vld [vmem:[%s1 + $0x84] sm:$0xf]
        %v676 = vld [vmem:[%s1 + $0x88] sm:$0xf]
        %v677 = vld [vmem:[%s1 + $0x8c] sm:$0xf]
        %v678 = vpack.c.bf16 %v616, %v614
        %v679 = vpack.c.bf16 %v617, %v615
        %v680 = vpack.c.bf16 %v620, %v618
        %v681 = vpack.c.bf16 %v621, %v619
        %v682 = vpack.c.bf16 %v624, %v622
        %v683 = vpack.c.bf16 %v625, %v623
        %v684 = vpack.c.bf16 %v628, %v626
        %v685 = vpack.c.bf16 %v629, %v627
        %v686 = vpack.c.bf16 %v632, %v630
        %v687 = vpack.c.bf16 %v633, %v631
        %v688 = vpack.c.bf16 %v636, %v634
        %v689 = vpack.c.bf16 %v637, %v635
        %v690 = vpack.c.bf16 %v640, %v638
        %v691 = vpack.c.bf16 %v641, %v639
        %v692 = vpack.c.bf16 %v644, %v642
        %v693 = vpack.c.bf16 %v645, %v643
        %v694 = vld [vmem:[%s3 + $0x3] sm:$0x1]
        %v696 = vlaneseq
        %v697 = vshrl.u32 %v696, 7
        %v698 = vsub.s32 0, %v697
        %v699 = vrot.slane %v694, %v698
        %v733 = vunpack.c.l.b16 %v646
        %v734 = vunpack.c.l.b16 %v647
        %v735 = vunpack.c.l.b16 %v648
        %v736 = vunpack.c.l.b16 %v649
        %v737 = vunpack.c.l.b16 %v650
        %v738 = vunpack.c.l.b16 %v651
        %v739 = vunpack.c.l.b16 %v652
        %v740 = vunpack.c.l.b16 %v653
        %v741 = vunpack.c.l.b16 %v654
        %v742 = vunpack.c.l.b16 %v655
        %v743 = vunpack.c.l.b16 %v656
        %v744 = vunpack.c.l.b16 %v657
        %v745 = vunpack.c.l.b16 %v658
        %v746 = vunpack.c.l.b16 %v659
        %v747 = vunpack.c.l.b16 %v660
        %v748 = vunpack.c.l.b16 %v661
        %v749 = vunpack.c.l.b16 %v662
        %v750 = vunpack.c.l.b16 %v663
        %v751 = vunpack.c.l.b16 %v664
        %v752 = vunpack.c.l.b16 %v665
        %v753 = vunpack.c.l.b16 %v666
        %v754 = vunpack.c.l.b16 %v667
        %v755 = vunpack.c.l.b16 %v668
        %v756 = vunpack.c.l.b16 %v669
        %v757 = vunpack.c.l.b16 %v670
        %v758 = vunpack.c.l.b16 %v671
        %v759 = vunpack.c.l.b16 %v672
        %v760 = vunpack.c.l.b16 %v673
        %v761 = vunpack.c.l.b16 %v674
        %v762 = vunpack.c.l.b16 %v675
        %v763 = vunpack.c.l.b16 %v676
        %v764 = vunpack.c.l.b16 %v677
        %v765 = vpack.c.b16 %v734, %v733
        %v766 = vpack.c.b16 %v736, %v735
        %v767 = vpack.c.b16 %v738, %v737
        %v768 = vpack.c.b16 %v740, %v739
        %v769 = vpack.c.b16 %v742, %v741
        %v770 = vpack.c.b16 %v744, %v743
        %v771 = vpack.c.b16 %v746, %v745
        %v772 = vpack.c.b16 %v748, %v747
        %v773 = vpack.c.b16 %v750, %v749
        %v774 = vpack.c.b16 %v752, %v751
        %v775 = vpack.c.b16 %v754, %v753
        %v776 = vpack.c.b16 %v756, %v755
        %v777 = vpack.c.b16 %v758, %v757
        %v778 = vpack.c.b16 %v760, %v759
        %v779 = vpack.c.b16 %v762, %v761
        %v780 = vpack.c.b16 %v764, %v763
        %797 = vmatprep.subr.bf16.mxu0 0
        %798 = vmatpush1.bf16.msra.mxu0 %v765
        %799 = vmatprep.subr.bf16.mxu0 0
        %800 = vmatpush1.bf16.msra.mxu0 %v766
        %801 = vmatprep.subr.bf16.mxu0 0
        %802 = vmatpush1.bf16.msra.mxu0 %v767
        %803 = vmatprep.subr.bf16.mxu0 0
        %804 = vmatpush1.bf16.msra.mxu0 %v768
        %805 = vmatprep.subr.bf16.mxu0 0
        %806 = vmatpush1.bf16.msra.mxu0 %v769
        %807 = vmatprep.subr.bf16.mxu0 0
        %808 = vmatpush1.bf16.msra.mxu0 %v770
        %809 = vmatprep.subr.bf16.mxu0 0
        %810 = vmatpush1.bf16.msra.mxu0 %v771
        %811 = vmatprep.subr.bf16.mxu0 0
        %812 = vmatpush1.bf16.msra.mxu0 %v772
        %813 = vmatprep.subr.bf16.mxu0 0
        %814 = vmatpush1.bf16.msra.mxu0 %v773
        %815 = vmatprep.subr.bf16.mxu0 0
        %816 = vmatpush1.bf16.msra.mxu0 %v774
        %817 = vmatprep.subr.bf16.mxu0 0
        %818 = vmatpush1.bf16.msra.mxu0 %v775
        %819 = vmatprep.subr.bf16.mxu0 0
        %820 = vmatpush1.bf16.msra.mxu0 %v776
        %821 = vmatprep.subr.bf16.mxu0 0
        %822 = vmatpush1.bf16.msra.mxu0 %v777
        %823 = vmatprep.subr.bf16.mxu0 0
        %824 = vmatpush1.bf16.msra.mxu0 %v778
        %825 = vmatprep.subr.bf16.mxu0 0
        %826 = vmatpush1.bf16.msra.mxu0 %v779
        %827 = vmatprep.subr.bf16.mxu0 0
        %828 = vmatpush1.bf16.msra.mxu0 %v780
        %829 = vmatprep.mubr.bf16.mxu0 %v679
        %830 = vmatmul.mubr.bf16.gmra.mrb[0].mxu0 %v678
        %v831 = vpop.f32.mrb[0].mxu0
        %v832 = vadd.f32 %v699, %v831
        %v833 = vpop.f32.mrb[0].mxu0
        %v834 = vpop.f32.mrb[0].mxu0
        %v835 = vadd.f32 %v699, %v834
        %v836 = vpop.f32.mrb[0].mxu0
        %837 = vmatprep.mubr.bf16.mxu0 %v681
        %838 = vmatmul.mubr.bf16.gmra.mrb[0].mxu0 %v680
        %v839 = vpop.f32.mrb[0].mxu0
        %v840 = vadd.f32 %v699, %v839
        %v841 = vpop.f32.mrb[0].mxu0
        %v842 = vpop.f32.mrb[0].mxu0
        %v843 = vadd.f32 %v699, %v842
        %v844 = vpop.f32.mrb[0].mxu0
        %845 = vmatprep.mubr.bf16.mxu0 %v683
        %846 = vmatmul.mubr.bf16.gmra.mrb[0].mxu0 %v682
        %v847 = vpop.f32.mrb[0].mxu0
        %v848 = vadd.f32 %v699, %v847
        %v849 = vpop.f32.mrb[0].mxu0
        %v850 = vpop.f32.mrb[0].mxu0
        %v851 = vadd.f32 %v699, %v850
        %v852 = vpop.f32.mrb[0].mxu0
        %853 = vmatprep.mubr.bf16.mxu0 %v685
        %854 = vmatmul.mubr.bf16.gmra.mrb[0].mxu0 %v684
        %v855 = vpop.f32.mrb[0].mxu0
        %v856 = vadd.f32 %v699, %v855
        %v857 = vpop.f32.mrb[0].mxu0
        %v858 = vpop.f32.mrb[0].mxu0
        %v859 = vadd.f32 %v699, %v858
        %v860 = vpop.f32.mrb[0].mxu0
        %861 = vmatprep.mubr.bf16.mxu0 %v687
        %862 = vmatmul.mubr.bf16.gmra.mrb[0].mxu0 %v686
        %v863 = vpop.f32.mrb[0].mxu0
        %v864 = vadd.f32 %v699, %v863
        %v865 = vpop.f32.mrb[0].mxu0
        %v866 = vpop.f32.mrb[0].mxu0
        %v867 = vadd.f32 %v699, %v866
        %v868 = vpop.f32.mrb[0].mxu0
        %869 = vmatprep.mubr.bf16.mxu0 %v689
        %870 = vmatmul.mubr.bf16.gmra.mrb[0].mxu0 %v688
        %v871 = vpop.f32.mrb[0].mxu0
        %v872 = vadd.f32 %v699, %v871
        %v873 = vpop.f32.mrb[0].mxu0
        %v874 = vpop.f32.mrb[0].mxu0
        %v875 = vadd.f32 %v699, %v874
        %v876 = vpop.f32.mrb[0].mxu0
        %877 = vmatprep.mubr.bf16.mxu0 %v691
        %878 = vmatmul.mubr.bf16.gmra.mrb[0].mxu0 %v690
        %v879 = vpop.f32.mrb[0].mxu0
        %v880 = vadd.f32 %v699, %v879
        %v881 = vpop.f32.mrb[0].mxu0
        %v882 = vpop.f32.mrb[0].mxu0
        %v883 = vadd.f32 %v699, %v882
        %v884 = vpop.f32.mrb[0].mxu0
        %885 = vmatprep.mubr.bf16.mxu0 %v693
        %886 = vmatmul.mubr.bf16.gmra.mrb[0].mxu0 %v692
        %v887 = vpop.f32.mrb[0].mxu0
        %v888 = vadd.f32 %v699, %v887
        %v889 = vpop.f32.mrb[0].mxu0
        %v890 = vpop.f32.mrb[0].mxu0
        %v891 = vadd.f32 %v699, %v890
        %v892 = vpop.f32.mrb[0].mxu0
        %893 = vdwg.mxu0
        %894 = vst [vmem:[%s191] sm:$0xff] %v832
        %895 = vst [vmem:[%s191 + $0x8] sm:$0xff] %v835
        %896 = vst [vmem:[%s191 + $0x10] sm:$0xff] %v840
        %897 = vst [vmem:[%s191 + $0x18] sm:$0xff] %v843
        %898 = vst [vmem:[%s191 + $0x20] sm:$0xff] %v848
        %899 = vst [vmem:[%s191 + $0x28] sm:$0xff] %v851
        %900 = vst [vmem:[%s191 + $0x30] sm:$0xff] %v856
        %901 = vst [vmem:[%s191 + $0x38] sm:$0xff] %v859
        %902 = vst [vmem:[%s191 + $0x40] sm:$0xff] %v864
        %903 = vst [vmem:[%s191 + $0x48] sm:$0xff] %v867
        %904 = vst [vmem:[%s191 + $0x50] sm:$0xff] %v872
        %905 = vst [vmem:[%s191 + $0x58] sm:$0xff] %v875
        %906 = vst [vmem:[%s191 + $0x60] sm:$0xff] %v880
        %907 = vst [vmem:[%s191 + $0x68] sm:$0xff] %v883
        %908 = vst [vmem:[%s191 + $0x70] sm:$0xff] %v888
        %909 = vst [vmem:[%s191 + $0x78] sm:$0xff] %v891
        %s910 = sand.u32 %s115, 1
        %s911 = scalar_lea.sflag [#allocation3], %s910
        %s912 = sand.u32 %s115, 1
        %s913 = smul.addr %s912, 128
        %s914 = scalar_lea.vmem [#allocation2], %s913
        // Predicated region
        $region37: #{tpu_custom_call.1} parent=35 // pred_check
          %p915 = pneg %p125
        $region38: #{tpu_custom_call.1} parent=35 // pred_check_branch
          %917 = sbr.rel (%p915) target = $region40
        $region39: #{tpu_custom_call.1} parent=35 // pred_region
          %s918 = smul.u32 16, %s18
          %s920 = ssub.s32 2048, 2048
          %921 = vsyncadd %s911, %s920
          %s922 = smul.addr %s918, 128
          %s923 = scalar_lea.hbm %s4, %s922
          %s924 = sshll.u32 %s914, 4
          %s925 = int_to_ptr.vmem [resolvable:$true] %s924
          %930 = dma.vmem_to_hbm [thread:$0]  %s925, 2048, %s923, %s911, 128, 128, 8
        $region40: #{tpu_custom_call.1} parent=35 // pred_fallthru
          _
      $region36: #{tpu_custom_call.1} parent=5 // pred_fallthru
        _
      %p931 = scmp.le.s32.totalorder 2, %s13
      // Predicated region
      $region41: #{tpu_custom_call.1} parent=5 // pred_check
        %p932 = pneg %p931
      $region42: #{tpu_custom_call.1} parent=5 // pred_check_branch
        %934 = sbr.rel (%p932) target = $region44
      $region43: #{tpu_custom_call.1} parent=5 // pred_region
        %s935 = ssub.s32 %s13, 2
        // Predicated region
        $region45: #{tpu_custom_call.1} parent=43 // pred_check
          %p936 = pneg %p131
        $region46: #{tpu_custom_call.1} parent=43 // pred_check_branch
          %938 = sbr.rel (%p936) target = $region48
        $region47: #{tpu_custom_call.1} parent=43 // pred_region
          %s939 = sand.u32 %s116, 1
          %s940 = scalar_lea.sflag [#allocation3], %s939
          %s941 = sand.u32 %s116, 1
          %s942 = smul.addr %s941, 128
          %s943 = scalar_lea.vmem [#allocation2], %s942
          %944 = dma.done %s940, 2048
        $region48: #{tpu_custom_call.1} parent=43 // pred_fallthru
          _
      $region44: #{tpu_custom_call.1} parent=5 // pred_fallthru
        _
    $region6: #{tpu_custom_call.1} parent=1 // loop_footer
      %s17 = sadd.s32 1, %s13
    $region7: #{tpu_custom_call.1} parent=1 // loop_footer_branch
      %12 = sbr.rel target = $region3
    $region8: #{tpu_custom_call.1} parent=1 // loop_exit
      _
    %945 = vsyncpa [#allocation3], 1
    %s946 = scalar_lea.sflag [#allocation3], 1
    %947 = vsyncpa %s946, 1

</llo_original>
